<compile_context>
chip_gen: v5e
topology: v5e:2x2
jax: 0.10.0
libtpu: 0.0.40
codegen_flags: <defaults>
</compile_context>

<pallas_src>
import jax
import jax.numpy as jnp
from jax.experimental import pallas as pl
from jax.experimental.pallas import tpu as pltpu


def _physics_kernel(dt_ref, z_ref, q_ref, o_ref):
    # dt_ref: SMEM f32[1]; z_ref: VMEM [tb, 6]; q_ref: VMEM [tb, 1]; o_ref: VMEM [tb, 2]
    dt = dt_ref[0]
    q = q_ref[...].astype(jnp.float32) * dt            # [tb, 1], per-sample control
    z = z_ref[...].astype(jnp.float32)                 # [tb, 6]
    half_q2 = 0.5 * (q * q)                            # [tb, 1]
    # channel pairs: pos = z[:, 0:2], vel = z[:, 2:4], acc = z[:, 4:6]
    out = z[:, 0:2] + z[:, 2:4] * q + z[:, 4:6] * half_q2
    o_ref[...] = out.astype(o_ref.dtype)


def _round_up(x, m):
    return ((x + m - 1) // m) * m


def physics_layer_forward(z: jax.Array, q: jax.Array, dt: float = 1.0 / 10) -> jax.Array:
    """PhysicsLayer.forward as a Pallas TPU kernel.

    z: [B, 6, 1, 1]   (pos_x, pos_y, vel_x, vel_y, acc_x, acc_y)
    q: per-sample scalar control, any shape with B (or 1) elements,
       e.g. [B, 1, 1] as broadcast by the PyTorch module.
    returns: [B, 2, 1, 1]
    """
    assert z.ndim == 4 and z.shape[1] == 6, f"expected z of shape [B,6,1,1], got {z.shape}"
    B = z.shape[0]

    # Layout-trivial squeezes only (no pad / transpose / post-slice round-trips).
    z2 = z.reshape(B, 6)
    if q.size == B:
        q2 = q.reshape(B, 1)
    elif q.size == 1:
        q2 = jnp.broadcast_to(q.reshape(1, 1), (B, 1))
    else:
        raise ValueError(f"q must have B or 1 elements, got shape {q.shape}")

    # Frozen parameter dt -> SMEM scalar (f32; compute is done in f32).
    dt_arr = jnp.asarray([dt], dtype=jnp.float32)

    # Dtype-aware sublane multiple: 8 rows for 4-byte, 16 for 2-byte, 32 for 1-byte.
    itemsize = jnp.dtype(z.dtype).itemsize
    sub_mult = (32 // (itemsize * 8)) * 8
    # Large batch tile (rows); 2048 keeps the double-buffered VMEM working set
    # (z + q + out, lane-padded) at ~6 MiB, safe on v7x/v6e/v5e defaults.
    tb = min(_round_up(B, sub_mult), 2048)
    nb = pl.cdiv(B, tb)

    out2 = pl.pallas_call(
        _physics_kernel,
        out_shape=jax.ShapeDtypeStruct((B, 2), z.dtype),
        grid_spec=pltpu.PrefetchScalarGridSpec(
            num_scalar_prefetch=0,
            grid=(nb,),
            in_specs=[
                pl.BlockSpec(memory_space=pltpu.MemorySpace.SMEM),   # dt scalar
                pl.BlockSpec((tb, 6), lambda i: (i, 0)),             # z block
                pl.BlockSpec((tb, 1), lambda i: (i, 0)),             # q block
            ],
            out_specs=pl.BlockSpec((tb, 2), lambda i: (i, 0)),
        ),
        compiler_params=pltpu.CompilerParams(
            dimension_semantics=("parallel",),
        ),
    )(dt_arr, z2, q2)

    return out2.reshape(B, 2, 1, 1)


if __name__ == "__main__":
    key = jax.random.PRNGKey(0)
    kz, kq = jax.random.split(key)

    B = 8
    dt = 1.0 / 10
    z = jax.random.normal(kz, (B, 6, 1, 1), dtype=jnp.float32)
    q = jax.random.normal(kq, (B, 1, 1), dtype=jnp.float32)

    out = physics_layer_forward(z, q, dt=dt)
    out = jax.block_until_ready(out)

    # Pure-JAX reference mirroring the PyTorch forward.
    z_flat = z.reshape(B, 6)
    q_flat = q.reshape(B) * dt
    ref0 = z_flat[:, 0] + z_flat[:, 2] * q_flat + z_flat[:, 4] * 0.5 * q_flat ** 2
    ref1 = z_flat[:, 1] + z_flat[:, 3] * q_flat + z_flat[:, 5] * 0.5 * q_flat ** 2
    ref = jnp.stack([ref0, ref1], axis=1).reshape(B, 2, 1, 1)

    assert out.shape == (B, 2, 1, 1) and out.dtype == z.dtype
    assert bool(jnp.allclose(out, ref, atol=1e-5, rtol=1e-5)), "mismatch vs reference"

    print("KERNEL_OK")
</pallas_src>

<mosaic_0001>
module attributes {stable_mosaic.version = 11 : i64} {
  func.func @_physics_kernel(%arg0: i32, %arg1: memref<1xf32, #tpu.memory_space<smem>>, %arg2: memref<8x6xf32, #tpu.memory_space<vmem>>, %arg3: memref<8x1xf32, #tpu.memory_space<vmem>>, %arg4: memref<8x2xf32, #tpu.memory_space<vmem>>) attributes {dimension_semantics = [#tpu.dimension_semantics<parallel>], iteration_bounds = array<i64: 1>, scalar_prefetch = 0 : i64, scratch_operands = 0 : i64, tpu.core_type = #tpu.core_type<tc>, window_params = [{transform_indices = @transform_0, window_bounds = array<i64: 1>}, {transform_indices = @transform_1, window_bounds = array<i64: 8, 6>}, {transform_indices = @transform_2, window_bounds = array<i64: 8, 1>}, {transform_indices = @transform_3, window_bounds = array<i64: 8, 2>}]} {
    %c0 = arith.constant 0 : index
    %0 = memref.load %arg1[%c0] : memref<1xf32, #tpu.memory_space<smem>>
    %c0_0 = arith.constant 0 : index
    %c0_1 = arith.constant 0 : index
    %1 = vector.load %arg3[%c0_0, %c0_1] : memref<8x1xf32, #tpu.memory_space<vmem>>, vector<8x1xf32>
    %2 = vector.broadcast %0 : f32 to vector<8x1xf32>
    %3 = arith.mulf %1, %2 : vector<8x1xf32>
    %c0_2 = arith.constant 0 : index
    %c0_3 = arith.constant 0 : index
    %4 = vector.load %arg2[%c0_2, %c0_3] : memref<8x6xf32, #tpu.memory_space<vmem>>, vector<8x6xf32>
    %5 = arith.mulf %3, %3 : vector<8x1xf32>
    %cst = arith.constant 5.000000e-01 : f32
    %6 = vector.broadcast %cst : f32 to vector<8x1xf32>
    %7 = arith.mulf %6, %5 : vector<8x1xf32>
    %8 = vector.extract_strided_slice %4 {offsets = [0, 0], sizes = [8, 2], strides = [1, 1]} : vector<8x6xf32> to vector<8x2xf32>
    %9 = vector.extract_strided_slice %4 {offsets = [0, 2], sizes = [8, 2], strides = [1, 1]} : vector<8x6xf32> to vector<8x2xf32>
    %10 = vector.broadcast %3 : vector<8x1xf32> to vector<8x2xf32>
    %11 = arith.mulf %9, %10 : vector<8x2xf32>
    %12 = arith.addf %8, %11 : vector<8x2xf32>
    %13 = vector.extract_strided_slice %4 {offsets = [0, 4], sizes = [8, 2], strides = [1, 1]} : vector<8x6xf32> to vector<8x2xf32>
    %14 = vector.broadcast %7 : vector<8x1xf32> to vector<8x2xf32>
    %15 = arith.mulf %13, %14 : vector<8x2xf32>
    %16 = arith.addf %12, %15 : vector<8x2xf32>
    %c0_4 = arith.constant 0 : index
    %c0_5 = arith.constant 0 : index
    %17 = vector.load %arg4[%c0_4, %c0_5] : memref<8x2xf32, #tpu.memory_space<vmem>>, vector<8x2xf32>
    tpu.vector_store %arg4[%c0_4, %c0_5], %16 {strides = array<i32>} : memref<8x2xf32, #tpu.memory_space<vmem>>, vector<8x2xf32>,
    return
  }
  func.func @transform_0(%arg0: i32) -> i32 {
    %c0_i32 = arith.constant 0 : i32
    %c0_i32_0 = arith.constant 0 : i32
    return %c0_i32 : i32
  }
  func.func @transform_1(%arg0: i32) -> (i32, i32) {
    %c0_i32 = arith.constant 0 : i32
    %c0_i32_0 = arith.constant 0 : i32
    return %arg0, %c0_i32 : i32, i32
  }
  func.func @transform_2(%arg0: i32) -> (i32, i32) {
    %c0_i32 = arith.constant 0 : i32
    %c0_i32_0 = arith.constant 0 : i32
    return %arg0, %c0_i32 : i32, i32
  }
  func.func @transform_3(%arg0: i32) -> (i32, i32) {
    %c0_i32 = arith.constant 0 : i32
    %c0_i32_0 = arith.constant 0 : i32
    return %arg0, %c0_i32 : i32, i32
  }
}

</mosaic_0001>

<llo_original>
// kernel: tpu_custom_call.1
$region0: #{tpu_custom_call.1}
  #allocation0 [shape = 'u32[]', space=smem, size = 0x4, offset = 0x4, fixed_abs, tag = 'smem constant byte address 0x4 - core index']
  #allocation1 [shape = 'u32[72,128]{1,0:T(1,128)}', space=vmem, size = 0x9000, scoped, tag = 'internal scratch']
  #allocation2 [shape = 'f32[1]{0:T(128)S(6)}', space=smem, size = 0x200, scoped, tag = 'scoped memory for tpu_custom_call.1']
  %s0 = inlined_call_operand.<no memory space> [shape: f32[1], index: 0, kind: input, shape index: {}]
  %s1 = inlined_call_operand.vmem [shape: f32[8,6], index: 1, kind: input, shape index: {}]
  %s2 = inlined_call_operand.vmem [shape: f32[8,1], index: 2, kind: input, shape index: {}]
  %s3 = inlined_call_operand.vmem [shape: f32[8,2], index: 3, kind: output, shape index: {}]
  %s4 = sld [smem:[#allocation0]]
  $region22: #{tpu_custom_call.1} parent=0
    _
  %s6 = ssub.s32 1, %s4
  %s7 = scalar_select 0, %s6, %s4
  %8 = sst [smem:[#allocation2]] %s0
  // Predicated region
  $region2: #{tpu_custom_call.1} parent=0 // pred_check
    _
  $region3: #{tpu_custom_call.1} parent=0 // pred_check_branch
    %10 = sbr.rel (0) target = $region5
  $region4: #{tpu_custom_call.1} parent=0 // pred_region
    _
  $region5: #{tpu_custom_call.1} parent=0 // pred_fallthru
    _
  // Predicated region
  $region6: #{tpu_custom_call.1} parent=0 // pred_check
    _
  $region7: #{tpu_custom_call.1} parent=0 // pred_check_branch
    %12 = sbr.rel (0) target = $region9
  $region8: #{tpu_custom_call.1} parent=0 // pred_region
    _
  $region9: #{tpu_custom_call.1} parent=0 // pred_fallthru
    _
  // Predicated region
  $region10: #{tpu_custom_call.1} parent=0 // pred_check
    _
  $region11: #{tpu_custom_call.1} parent=0 // pred_check_branch
    %14 = sbr.rel (0) target = $region13
  $region12: #{tpu_custom_call.1} parent=0 // pred_region
    _
  $region13: #{tpu_custom_call.1} parent=0 // pred_fallthru
    _
  %s15 = sld [smem:[#allocation2]]
  %v16 = vld [vmem:[%s2] sm:$0xff]
  %v17 = vstv %s15
  %v18 = vmul.f32 %v16, %v17
  %v19 = vld [vmem:[%s1] sm:$0xff]
  %v20 = vmul.f32 %v18, %v18
  %v21 = vmul.f32 %v20, 0.5
  %23 = vset.pattern.permute.xlu0 0
  %24 = vperm.xlu0 %23, %v18
  %v25 = vpop.permute.xlu0 %24
  %v27 = vmul.f32 %v19, %v25
  %29 = vrot.lane.b32.xlu0 %v27, 126
  %v30 = vpop.permute.xlu0 %29
  %v32 = vadd.f32 %v19, %v30
  %34 = vset.pattern.permute.xlu0 0
  %35 = vperm.xlu0 %34, %v21
  %v36 = vpop.permute.xlu0 %35
  %v38 = vmul.f32 %v19, %v36
  %40 = vrot.lane.b32.xlu0 %v38, 124
  %v41 = vpop.permute.xlu0 %40
  %v43 = vadd.f32 %v32, %v41
  %vm44 = vcmask 15360
  %45 = vst.msk [vmem:[%s3] sm:$0xff] %vm44, %v43
  // Predicated region
  $region14: #{tpu_custom_call.1} parent=0 // pred_check
    _
  $region15: #{tpu_custom_call.1} parent=0 // pred_check_branch
    %47 = sbr.rel (0) target = $region17
  $region16: #{tpu_custom_call.1} parent=0 // pred_region
    _
  $region17: #{tpu_custom_call.1} parent=0 // pred_fallthru
    _
  // Predicated region
  $region18: #{tpu_custom_call.1} parent=0 // pred_check
    _
  $region19: #{tpu_custom_call.1} parent=0 // pred_check_branch
    %49 = sbr.rel (0) target = $region21
  $region20: #{tpu_custom_call.1} parent=0 // pred_region
    _
  $region21: #{tpu_custom_call.1} parent=0 // pred_fallthru
    _

</llo_original>
